<compile_context>
chip_gen: v6e
topology: v6e:2x2x1
jax: 0.10.0
libtpu: 0.0.40
codegen_flags: <defaults>
</compile_context>

<pallas_src>
import functools

import jax
import jax.numpy as jnp
from jax.experimental import pallas as pl
from jax.experimental.pallas import tpu as pltpu


# ----------------------------- Pallas kernel -------------------------------

def actor_critic_kernel(
    embed_ref,   # [T, E]       (any float dtype; cast to bf16 for the MXU)
    w1_ref,      # [E, Ha+Hc]   bf16  fused first layer (actor | critic)
    b1_ref,      # [1, Ha+Hc]   f32
    w2_ref,      # [Ha+Hc, A+1] bf16  block-diagonal second layer
    b2_ref,      # [1, A+1]     f32
    mask_ref,    # [T, A]       int8  0/1 availability mask
    xfer_ref,    # [T, 1]       i32   selected xfer index
    out_ref,     # [T, 3]       f32   columns = (value, logprob, entropy)
):
    a = mask_ref.shape[1]
    t = embed_ref.shape[0]

    # Fused first layer (actor | critic) + ReLU: one bf16 MXU push, f32 accumulate.
    x = embed_ref[...].astype(jnp.bfloat16)
    h = jnp.dot(x, w1_ref[...], preferred_element_type=jnp.float32) + b1_ref[...]
    h = jnp.maximum(h, 0.0)

    # Fused block-diagonal second layer: cols [0, A) = actor logits, col A = value.
    y = (jnp.dot(h.astype(jnp.bfloat16), w2_ref[...],
                 preferred_element_type=jnp.float32) + b2_ref[...])
    logits = y[:, :a]
    value = y[:, a:a + 1]

    # ---- masked softmax statistics over the action (lane) axis ----
    # NOTE: finite -1e30 sentinel (NOT -inf) so 0*sentinel stays finite; rows
    # with an all-zero mask are the caller's responsibility (>=1 valid action).
    mask = mask_ref[...] != 0
    masked = jnp.where(mask, logits, jnp.float32(-1e30))
    m = jnp.max(masked, axis=-1, keepdims=True)             # [T, 1]
    shifted = masked - m                                     # <= 0; ~-1e30 if masked out
    e = jnp.exp(shifted)                                     # exact 0 where masked out
    denom = jnp.sum(e, axis=-1, keepdims=True)               # [T, 1], >= 1
    logdenom = jnp.log(denom)

    # log-prob of the selected xfer: lane select (no one-hot temp) + lane sum.
    col = jax.lax.broadcasted_iota(jnp.int32, (t, a), dimension=1)
    s_sel = jnp.sum(jnp.where(col == xfer_ref[...], shifted, 0.0),
                    axis=-1, keepdims=True)
    logprob = s_sel - logdenom

    # entropy = log(denom) - E_p[shifted]; e == 0 kills masked entries exactly.
    # Exact divide (approx reciprocal was too loose for the entropy term).
    entropy = logdenom - jnp.sum(e * shifted, axis=-1, keepdims=True) / denom

    # Three narrow slice stores instead of a lane concatenate.
    out_ref[:, 0:1] = value
    out_ref[:, 1:2] = logprob
    out_ref[:, 2:3] = entropy


# ------------------------------- wrapper ------------------------------------

def _round_up(x, m):
    return (x + m - 1) // m * m


def _choose_tile(n, tile_n):
    # int8 mask wants a row tile that's a multiple of 32 (min int8 sublane tile).
    tile = _round_up(max(32, min(tile_n, n)), 32)
    # Aim for >= 4 grid steps when N allows: 2 TensorCores (v7x) x double-buffer
    # pipelining both need a multi-step grid.
    if n >= 4 * 32:
        tile = min(tile, _round_up(pl.cdiv(n, 4), 32))
    return tile


@functools.partial(jax.jit, static_argnames=("tile_n",))
def actor_critic_forward(node_embeds, fused, masks, xfers, *, tile_n=2048):
    """evaluate() math on precomputed node embeddings.

    node_embeds: [N, E] (bf16 or f32); masks: [N, A] int8/bool 0/1; xfers: [N] int.
    fused: output of fuse_params() (bf16 weights, f32 biases, built once).
    Returns (values[N], xfer_logprobs[N], xfer_entropys[N]).
    """
    n, e_dim = node_embeds.shape
    a = masks.shape[1]
    h = fused["w1"].shape[1]

    # No pad / no f32 materialization of the big streams: int8 mask, tiny
    # int32 xfer column, embeddings passed through in their native dtype.
    masks_i8 = masks.astype(jnp.int8)                 # no-op if already int8
    xfers_i32 = xfers.astype(jnp.int32).reshape(n, 1)

    tile = _choose_tile(n, tile_n)
    grid = (pl.cdiv(n, tile),)                        # partial last block OK

    def row_spec(width):
        return pl.BlockSpec((tile, width), lambda i: (i, 0))

    def resident(shape):
        # Constant index_map -> weights DMA'd once, stay VMEM-resident.
        return pl.BlockSpec(shape, lambda i: (0, 0))

    cost = pl.CostEstimate(
        flops=2 * n * (e_dim * h + h * (a + 1)),
        transcendentals=n * (a + 1),
        bytes_accessed=(node_embeds.dtype.itemsize * n * e_dim   # embeddings
                        + n * a                                   # int8 mask
                        + 4 * n                                   # xfers
                        + 12 * n                                  # output
                        + 2 * (e_dim * h + h * (a + 1))           # bf16 weights
                        + 4 * (h + a + 1)),                       # f32 biases
    )

    out = pl.pallas_call(
        actor_critic_kernel,
        out_shape=jax.ShapeDtypeStruct((n, 3), jnp.float32),
        grid=grid,
        in_specs=[
            row_spec(e_dim),               # node embeddings [tile, E]
            resident((e_dim, h)),          # w1 (fused, bf16)
            resident((1, h)),              # b1 (fused, f32)
            resident((h, a + 1)),          # w2 (block-diagonal, bf16)
            resident((1, a + 1)),          # b2 (fused, f32)
            row_spec(a),                   # masks [tile, A] int8
            row_spec(1),                   # xfers [tile, 1] int32
        ],
        out_specs=pl.BlockSpec((tile, 3), lambda i: (i, 0)),
        compiler_params=pltpu.CompilerParams(
            dimension_semantics=("parallel",),   # shards tiles across TCs on v7x
            vmem_limit_bytes=48 * 1024 * 1024,   # safe on v7x's 64 MiB, roomy on v5e/v6e
        ),
        cost_estimate=cost,
    )(node_embeds, fused["w1"], fused["b1"], fused["w2"], fused["b2"],
      masks_i8, xfers_i32)

    return out[:, 0], out[:, 1], out[:, 2]


# --------------------------- parameter setup --------------------------------

def xavier_uniform(key, shape, gain):
    fan_in, fan_out = shape
    limit = gain * jnp.sqrt(6.0 / (fan_in + fan_out))
    return jax.random.uniform(key, shape, jnp.float32, -limit, limit)


def init_params(key, graph_embed_size, actor_hidden, critic_hidden, action_dim):
    gain = jnp.sqrt(2.0)  # nn.init.calculate_gain('relu')
    ks = jax.random.split(key, 4)
    return {
        # actor: Linear(E, Ha) -> ReLU -> Linear(Ha, A)
        "w1a": xavier_uniform(ks[0], (graph_embed_size, actor_hidden), gain),
        "b1a": jnp.zeros((1, actor_hidden), jnp.float32),
        "w2a": xavier_uniform(ks[1], (actor_hidden, action_dim), gain),
        "b2a": jnp.zeros((1, action_dim), jnp.float32),
        # critic: Linear(E, Hc) -> ReLU -> Linear(Hc, 1)
        "w1c": xavier_uniform(ks[2], (graph_embed_size, critic_hidden), gain),
        "b1c": jnp.zeros((1, critic_hidden), jnp.float32),
        "w2c": xavier_uniform(ks[3], (critic_hidden, 1), gain),
        "b2c": jnp.zeros((1, 1), jnp.float32),
    }


def fuse_params(params):
    """Build the MXU-ready fused weights ONCE, outside the hot path."""
    ha = params["w1a"].shape[1]
    hc = params["w1c"].shape[1]
    a = params["w2a"].shape[1]
    w1 = jnp.concatenate([params["w1a"], params["w1c"]], axis=1)   # [E, Ha+Hc]
    b1 = jnp.concatenate([params["b1a"], params["b1c"]], axis=1)   # [1, Ha+Hc]
    w2 = jnp.zeros((ha + hc, a + 1), jnp.float32)
    w2 = w2.at[:ha, :a].set(params["w2a"])
    w2 = w2.at[ha:, a:].set(params["w2c"])                         # [Ha+Hc, A+1]
    b2 = jnp.concatenate([params["b2a"], params["b2c"]], axis=1)   # [1, A+1]
    return {
        "w1": w1.astype(jnp.bfloat16),
        "b1": b1.astype(jnp.float32),
        "w2": w2.astype(jnp.bfloat16),
        "b2": b2.astype(jnp.float32),
    }


# ---------------------------- pure-JAX reference -----------------------------

def reference_forward(node_embeds, params, masks, xfers):
    """ActorCritic.evaluate() math; mirrors the kernel's bf16 MXU operands
    (f32 accumulation) so the comparison is apples-to-apples."""
    q = lambda v: v.astype(jnp.bfloat16).astype(jnp.float32)
    x = q(node_embeds)
    hc = jnp.maximum(x @ q(params["w1c"]) + params["b1c"], 0.0)
    values = (q(hc) @ q(params["w2c"]) + params["b2c"])[:, 0]
    ha = jnp.maximum(x @ q(params["w1a"]) + params["b1a"], 0.0)
    logits = q(ha) @ q(params["w2a"]) + params["b2a"]

    mask_f = (masks != 0).astype(jnp.float32)
    masked = jnp.where(mask_f > 0, logits, -1e30)
    m = jnp.max(masked, axis=-1, keepdims=True)
    e = jnp.exp(masked - m) * mask_f
    denom = jnp.sum(e, axis=-1, keepdims=True)
    probs = e / denom
    logp = (masked - m) - jnp.log(denom)
    logprobs = jnp.take_along_axis(logp, xfers[:, None].astype(jnp.int32),
                                   axis=-1)[:, 0]
    ent = -jnp.sum(jnp.where(mask_f > 0, probs * logp, 0.0), axis=-1)
    return values, logprobs, ent


# --------------------------------- main --------------------------------------

if __name__ == "__main__":
    # Small shapes consistent with the module's constructor arguments.
    N = 200               # number of (graph, node) pairs in the PPO evaluate batch
    GRAPH_EMBED = 32      # graph_embed_size
    ACTOR_HIDDEN = 32     # actor_hidden_size
    CRITIC_HIDDEN = 32    # critic_hidden_size
    ACTION_DIM = 128      # action_dim (num_xfers)
    TILE_N = 128          # small tile for the demo (multi-step grid + partial
                          # last block); production default is 2048 rows.

    key = jax.random.PRNGKey(0)
    k_embed, k_param, k_mask, k_xfer = jax.random.split(key, 4)

    # Stand-in for QGNN output graph embeddings gathered at the sampled nodes
    # (shipped in bf16 — halves the dominant HBM stream, MXU-native dtype).
    node_embeds = jax.random.normal(
        k_embed, (N, GRAPH_EMBED), jnp.float32).astype(jnp.bfloat16)
    params = init_params(k_param, GRAPH_EMBED, ACTOR_HIDDEN, CRITIC_HIDDEN,
                         ACTION_DIM)
    fused = fuse_params(params)

    # Availability masks as int8 (at least the selected xfer is always available).
    xfers = jax.random.randint(k_xfer, (N,), 0, ACTION_DIM, dtype=jnp.int32)
    masks = (jax.random.uniform(k_mask, (N, ACTION_DIM)) < 0.3).astype(jnp.int8)
    masks = masks.at[jnp.arange(N), xfers].set(1)

    values, logprobs, entropies = actor_critic_forward(
        node_embeds, fused, masks, xfers, tile_n=TILE_N)
    jax.block_until_ready((values, logprobs, entropies))

    v_ref, lp_ref, ent_ref = reference_forward(node_embeds, params, masks, xfers)
    assert jnp.allclose(values, v_ref, atol=1e-3, rtol=1e-3)
    assert jnp.allclose(logprobs, lp_ref, atol=1e-3, rtol=1e-3)
    assert jnp.allclose(entropies, ent_ref, atol=1e-3, rtol=1e-3)

    print("KERNEL_OK")
</pallas_src>

<mosaic_0001>
module attributes {stable_mosaic.version = 11 : i64} {
  func.func @actor_critic_kernel(%arg0: i32, %arg1: memref<64x32xbf16, #tpu.memory_space<vmem>>, %arg2: memref<32x64xbf16, #tpu.memory_space<vmem>>, %arg3: memref<1x64xf32, #tpu.memory_space<vmem>>, %arg4: memref<64x129xbf16, #tpu.memory_space<vmem>>, %arg5: memref<1x129xf32, #tpu.memory_space<vmem>>, %arg6: memref<64x128xi8, #tpu.memory_space<vmem>>, %arg7: memref<64x1xi32, #tpu.memory_space<vmem>>, %arg8: memref<64x3xf32, #tpu.memory_space<vmem>>) attributes {dimension_semantics = [#tpu.dimension_semantics<parallel>], iteration_bounds = array<i64: 4>, scalar_prefetch = 0 : i64, scratch_operands = 0 : i64, tpu.core_type = #tpu.core_type<tc>, window_params = [{transform_indices = @transform_0, window_bounds = array<i64: 64, 32>}, {pipeline_mode = #tpu.pipeline_mode<synchronous>, transform_indices = @transform_1, window_bounds = array<i64: 32, 64>}, {pipeline_mode = #tpu.pipeline_mode<synchronous>, transform_indices = @transform_2, window_bounds = array<i64: 1, 64>}, {pipeline_mode = #tpu.pipeline_mode<synchronous>, transform_indices = @transform_3, window_bounds = array<i64: 64, 129>}, {pipeline_mode = #tpu.pipeline_mode<synchronous>, transform_indices = @transform_4, window_bounds = array<i64: 1, 129>}, {transform_indices = @transform_5, window_bounds = array<i64: 64, 128>}, {transform_indices = @transform_6, window_bounds = array<i64: 64, 1>}, {transform_indices = @transform_7, window_bounds = array<i64: 64, 3>}]} {
    %c0 = arith.constant 0 : index
    %c0_0 = arith.constant 0 : index
    %0 = vector.load %arg1[%c0, %c0_0] : memref<64x32xbf16, #tpu.memory_space<vmem>>, vector<64x32xbf16>
    %c0_1 = arith.constant 0 : index
    %c0_2 = arith.constant 0 : index
    %1 = vector.load %arg2[%c0_1, %c0_2] : memref<32x64xbf16, #tpu.memory_space<vmem>>, vector<32x64xbf16>
    %cst = arith.constant dense<0.000000e+00> : vector<64x64xf32>
    %2 = tpu.matmul %0, %1, %cst {dimension_numbers = #tpu.dot_dimension_numbers<[1], [0], [0], [1], [0, 0, 1, 1], [], []>} : vector<64x32xbf16>, vector<32x64xbf16>, vector<64x64xf32> -> vector<64x64xf32>
    %c0_3 = arith.constant 0 : index
    %c0_4 = arith.constant 0 : index
    %3 = vector.load %arg3[%c0_3, %c0_4] : memref<1x64xf32, #tpu.memory_space<vmem>>, vector<1x64xf32>
    %4 = vector.broadcast %3 : vector<1x64xf32> to vector<64x64xf32>
    %5 = arith.addf %2, %4 : vector<64x64xf32>
    %cst_5 = arith.constant 0.000000e+00 : f32
    %6 = vector.broadcast %cst_5 : f32 to vector<64x64xf32>
    %7 = arith.maximumf %5, %6 : vector<64x64xf32>
    %8 = arith.truncf %7 : vector<64x64xf32> to vector<64x64xbf16>
    %c0_6 = arith.constant 0 : index
    %c0_7 = arith.constant 0 : index
    %9 = vector.load %arg4[%c0_6, %c0_7] : memref<64x129xbf16, #tpu.memory_space<vmem>>, vector<64x129xbf16>
    %cst_8 = arith.constant dense<0.000000e+00> : vector<64x129xf32>
    %10 = tpu.matmul %8, %9, %cst_8 {dimension_numbers = #tpu.dot_dimension_numbers<[1], [0], [0], [1], [0, 0, 1, 1], [], []>} : vector<64x64xbf16>, vector<64x129xbf16>, vector<64x129xf32> -> vector<64x129xf32>
    %c0_9 = arith.constant 0 : index
    %c0_10 = arith.constant 0 : index
    %11 = vector.load %arg5[%c0_9, %c0_10] : memref<1x129xf32, #tpu.memory_space<vmem>>, vector<1x129xf32>
    %12 = vector.broadcast %11 : vector<1x129xf32> to vector<64x129xf32>
    %13 = arith.addf %10, %12 : vector<64x129xf32>
    %14 = vector.extract_strided_slice %13 {offsets = [0, 0], sizes = [64, 128], strides = [1, 1]} : vector<64x129xf32> to vector<64x128xf32>
    %15 = vector.extract_strided_slice %13 {offsets = [0, 128], sizes = [64, 1], strides = [1, 1]} : vector<64x129xf32> to vector<64x1xf32>
    %c0_11 = arith.constant 0 : index
    %c0_12 = arith.constant 0 : index
    %16 = vector.load %arg6[%c0_11, %c0_12] : memref<64x128xi8, #tpu.memory_space<vmem>>, vector<64x128xi8>
    %c0_i8 = arith.constant 0 : i8
    %17 = vector.broadcast %c0_i8 : i8 to vector<64x128xi8>
    %18 = arith.cmpi ne, %16, %17 : vector<64x128xi8>
    %cst_13 = arith.constant -1.000000e+30 : f32
    %19 = vector.broadcast %cst_13 : f32 to vector<64x128xf32>
    %20 = arith.select %18, %14, %19 : vector<64x128xi1>, vector<64x128xf32>
    %cst_14 = arith.constant dense<0xFF800000> : vector<64xf32>
    %21 = vector.multi_reduction <maximumf>, %20, %cst_14 [1] : vector<64x128xf32> to vector<64xf32>
    %22 = vector.shape_cast %21 : vector<64xf32> to vector<64x1xf32>
    %23 = vector.broadcast %22 : vector<64x1xf32> to vector<64x128xf32>
    %24 = arith.subf %20, %23 : vector<64x128xf32>
    %25 = math.exp %24 : vector<64x128xf32>
    %cst_15 = arith.constant dense<0.000000e+00> : vector<64xf32>
    %26 = vector.multi_reduction <add>, %25, %cst_15 [1] : vector<64x128xf32> to vector<64xf32>
    %27 = vector.shape_cast %26 : vector<64xf32> to vector<64x1xf32>
    %28 = math.log %27 : vector<64x1xf32>
    %29 = tpu.iota {dimensions = array<i32: 1>} : vector<64x128xi32>
    %c0_16 = arith.constant 0 : index
    %c0_17 = arith.constant 0 : index
    %30 = vector.load %arg7[%c0_16, %c0_17] : memref<64x1xi32, #tpu.memory_space<vmem>>, vector<64x1xi32>
    %31 = vector.broadcast %30 : vector<64x1xi32> to vector<64x128xi32>
    %32 = arith.cmpi eq, %29, %31 : vector<64x128xi32>
    %cst_18 = arith.constant 0.000000e+00 : f32
    %33 = vector.broadcast %cst_18 : f32 to vector<64x128xf32>
    %34 = arith.select %32, %24, %33 : vector<64x128xi1>, vector<64x128xf32>
    %cst_19 = arith.constant dense<0.000000e+00> : vector<64xf32>
    %35 = vector.multi_reduction <add>, %34, %cst_19 [1] : vector<64x128xf32> to vector<64xf32>
    %36 = vector.shape_cast %35 : vector<64xf32> to vector<64x1xf32>
    %37 = arith.subf %36, %28 : vector<64x1xf32>
    %38 = arith.mulf %25, %24 : vector<64x128xf32>
    %cst_20 = arith.constant dense<0.000000e+00> : vector<64xf32>
    %39 = vector.multi_reduction <add>, %38, %cst_20 [1] : vector<64x128xf32> to vector<64xf32>
    %40 = vector.shape_cast %39 : vector<64xf32> to vector<64x1xf32>
    %41 = arith.divf %40, %27 : vector<64x1xf32>
    %42 = arith.subf %28, %41 : vector<64x1xf32>
    %c0_21 = arith.constant 0 : index
    %c0_22 = arith.constant 0 : index
    %43 = vector.load %arg8[%c0_21, %c0_22] : memref<64x3xf32, #tpu.memory_space<vmem>>, vector<64x1xf32>
    tpu.vector_store %arg8[%c0_21, %c0_22], %15 {strides = array<i32>} : memref<64x3xf32, #tpu.memory_space<vmem>>, vector<64x1xf32>,
    %c0_23 = arith.constant 0 : index
    %c1 = arith.constant 1 : index
    %44 = vector.load %arg8[%c0_23, %c1] : memref<64x3xf32, #tpu.memory_space<vmem>>, vector<64x1xf32>
    tpu.vector_store %arg8[%c0_23, %c1], %37 {strides = array<i32>} : memref<64x3xf32, #tpu.memory_space<vmem>>, vector<64x1xf32>,
    %c0_24 = arith.constant 0 : index
    %c2 = arith.constant 2 : index
    %45 = vector.load %arg8[%c0_24, %c2] : memref<64x3xf32, #tpu.memory_space<vmem>>, vector<64x1xf32>
    tpu.vector_store %arg8[%c0_24, %c2], %42 {strides = array<i32>} : memref<64x3xf32, #tpu.memory_space<vmem>>, vector<64x1xf32>,
    return
  }
  func.func @transform_0(%arg0: i32) -> (i32, i32) {
    %c0_i32 = arith.constant 0 : i32
    %c0_i32_0 = arith.constant 0 : i32
    return %arg0, %c0_i32 : i32, i32
  }
  func.func @transform_1(%arg0: i32) -> (i32, i32) {
    %c0_i32 = arith.constant 0 : i32
    %c0_i32_0 = arith.constant 0 : i32
    %c0_i32_1 = arith.constant 0 : i32
    return %c0_i32, %c0_i32_0 : i32, i32
  }
  func.func @transform_2(%arg0: i32) -> (i32, i32) {
    %c0_i32 = arith.constant 0 : i32
    %c0_i32_0 = arith.constant 0 : i32
    %c0_i32_1 = arith.constant 0 : i32
    return %c0_i32, %c0_i32_0 : i32, i32
  }
  func.func @transform_3(%arg0: i32) -> (i32, i32) {
    %c0_i32 = arith.constant 0 : i32
    %c0_i32_0 = arith.constant 0 : i32
    %c0_i32_1 = arith.constant 0 : i32
    return %c0_i32, %c0_i32_0 : i32, i32
  }
  func.func @transform_4(%arg0: i32) -> (i32, i32) {
    %c0_i32 = arith.constant 0 : i32
    %c0_i32_0 = arith.constant 0 : i32
    %c0_i32_1 = arith.constant 0 : i32
    return %c0_i32, %c0_i32_0 : i32, i32
  }
  func.func @transform_5(%arg0: i32) -> (i32, i32) {
    %c0_i32 = arith.constant 0 : i32
    %c0_i32_0 = arith.constant 0 : i32
    return %arg0, %c0_i32 : i32, i32
  }
  func.func @transform_6(%arg0: i32) -> (i32, i32) {
    %c0_i32 = arith.constant 0 : i32
    %c0_i32_0 = arith.constant 0 : i32
    return %arg0, %c0_i32 : i32, i32
  }
  func.func @transform_7(%arg0: i32) -> (i32, i32) {
    %c0_i32 = arith.constant 0 : i32
    %c0_i32_0 = arith.constant 0 : i32
    return %arg0, %c0_i32 : i32, i32
  }
}

</mosaic_0001>

<llo_original>
// kernel: actor_critic_forward.1
$region0: #{actor_critic_forward.1}
  #allocation0 [shape = 'u32[]', space=smem, size = 0x4, offset = 0x4, fixed_abs, tag = 'smem constant byte address 0x4 - core index']
  #allocation1 [shape = 'u32[144,128]{1,0:T(1,128)}', space=vmem, size = 0x12000, scoped, tag = 'internal scratch']
  %s0 = inlined_call_operand.vmem [shape: bf16[200,32], index: 0, kind: input, shape index: {}]
  %s1 = inlined_call_operand.vmem [shape: bf16[32,64], index: 1, kind: input, shape index: {}]
  %s2 = inlined_call_operand.vmem [shape: f32[1,64], index: 2, kind: input, shape index: {}]
  %s3 = inlined_call_operand.vmem [shape: bf16[64,129], index: 3, kind: input, shape index: {}]
  %s4 = inlined_call_operand.vmem [shape: f32[1,129], index: 4, kind: input, shape index: {}]
  %s5 = inlined_call_operand.vmem [shape: s8[200,128], index: 5, kind: input, shape index: {}]
  %s6 = inlined_call_operand.vmem [shape: s32[200,1], index: 6, kind: input, shape index: {}]
  %s7 = inlined_call_operand.vmem [shape: f32[200,3], index: 7, kind: output, shape index: {}]
  %s8 = sld [smem:[#allocation0]]
  $region109: #{actor_critic_forward.1} parent=0
    _
  %s10 = ssub.s32 1, %s8
  %s11 = scalar_select 0, %s10, %s8
  $region1: #{actor_critic_forward.1} parent=0
    #allocation2 [shape = 'u8[65536]{0}', space=vmem, size = 0x10000, scoped, tag = 'output window, operand 0']
    loop: start=0, step=1, limit=6
    $region2: #{actor_critic_forward.1} parent=1 // loop_pre_header
      _
    $region3: #{actor_critic_forward.1} parent=1 // loop_header
      %s13 = sphi 0, %s17
      %p14 = scmp.ge.s32.totalorder %s13, 6
      %s23 = sphi 0, %s25
      %s26 = sphi 0, %s23
      %s27 = sphi 0, %s26
      %s43 = sphi 0, %s27
      %s47 = sphi 0, %s47
      %s49 = sphi 0, %s47
      %s50 = sphi 0, %s49
      %s64 = sphi 0, %s50
      %s68 = sphi 0, %s68
      %s70 = sphi 0, %s68
      %s71 = sphi 0, %s70
      %s85 = sphi 0, %s71
      %s89 = sphi 0, %s89
      %s91 = sphi 0, %s89
      %s92 = sphi 0, %s91
      %s106 = sphi 0, %s92
      %s110 = sphi 0, %s110
      %s112 = sphi 0, %s110
      %s113 = sphi 0, %s112
      %s127 = sphi 0, %s113
      %s133 = sphi 0, %s135
      %s136 = sphi 0, %s133
      %s137 = sphi 0, %s136
      %s153 = sphi 0, %s137
      %s159 = sphi 0, %s161
      %s162 = sphi 0, %s159
      %s163 = sphi 0, %s162
      %s179 = sphi 0, %s163
      %s185 = sphi 0, %s187
      %s188 = sphi 0, %s185
      %s189 = sphi 0, %s188
      %s205 = sphi 0, %s189
    $region4: #{actor_critic_forward.1} parent=1 // loop_header_branch
      %16 = sbr.rel (%p14) target = $region8
    $region5: #{actor_critic_forward.1} parent=1 // loop_body
      %s18 = ssub.s32 %s13, 1
      %s19 = ssub.s32 %s13, 2
      %s20 = sadd.s32 %s13, 1
      %s21 = ssub.s32 %s13, %s20
      %p22 = scmp.eq.s32.totalorder %s21, 0
      %s24 = sadd.s32 %s23, 1
      %s25 = scalar_select %p22, %s23, %s24
      %p28 = pneg %p22
      %p29 = scmp.eq.s32.totalorder %s13, 3
      %p30 = por %p28, %p29
      %p31 = scmp.ne.s32.totalorder %s23, %s26
      %p32 = scmp.eq.s32.totalorder %s13, 0
      %p33 = por %p31, %p32
      %p34 = scmp.ne.s32.totalorder %s23, %s26
      %p35 = scmp.eq.s32.totalorder %s18, 3
      %p36 = por %p34, %p35
      %p37 = scmp.ne.s32.totalorder %s26, %s27
      %p38 = scmp.eq.s32.totalorder %s18, 0
      %p39 = por %p37, %p38
      %p40 = scmp.ne.s32.totalorder %s26, %s27
      %p41 = scmp.eq.s32.totalorder %s19, 3
      %p42 = por %p40, %p41
      %p44 = scmp.ne.s32.totalorder %s27, %s43
      %p45 = scmp.eq.s32.totalorder %s19, 0
      %p46 = por %p44, %p45
      %s48 = sadd.s32 %s47, 1
      %p51 = scmp.eq.s32.totalorder %s13, 3
      %p52 = scmp.ne.s32.totalorder %s47, %s49
      %p53 = scmp.eq.s32.totalorder %s13, 0
      %p54 = por %p52, %p53
      %p55 = scmp.ne.s32.totalorder %s47, %s49
      %p56 = scmp.eq.s32.totalorder %s18, 3
      %p57 = por %p55, %p56
      %p58 = scmp.ne.s32.totalorder %s49, %s50
      %p59 = scmp.eq.s32.totalorder %s18, 0
      %p60 = por %p58, %p59
      %p61 = scmp.ne.s32.totalorder %s49, %s50
      %p62 = scmp.eq.s32.totalorder %s19, 3
      %p63 = por %p61, %p62
      %p65 = scmp.ne.s32.totalorder %s50, %s64
      %p66 = scmp.eq.s32.totalorder %s19, 0
      %p67 = por %p65, %p66
      %s69 = sadd.s32 %s68, 1
      %p72 = scmp.eq.s32.totalorder %s13, 3
      %p73 = scmp.ne.s32.totalorder %s68, %s70
      %p74 = scmp.eq.s32.totalorder %s13, 0
      %p75 = por %p73, %p74
      %p76 = scmp.ne.s32.totalorder %s68, %s70
      %p77 = scmp.eq.s32.totalorder %s18, 3
      %p78 = por %p76, %p77
      %p79 = scmp.ne.s32.totalorder %s70, %s71
      %p80 = scmp.eq.s32.totalorder %s18, 0
      %p81 = por %p79, %p80
      %p82 = scmp.ne.s32.totalorder %s70, %s71
      %p83 = scmp.eq.s32.totalorder %s19, 3
      %p84 = por %p82, %p83
      %p86 = scmp.ne.s32.totalorder %s71, %s85
      %p87 = scmp.eq.s32.totalorder %s19, 0
      %p88 = por %p86, %p87
      %s90 = sadd.s32 %s89, 1
      %p93 = scmp.eq.s32.totalorder %s13, 3
      %p94 = scmp.ne.s32.totalorder %s89, %s91
      %p95 = scmp.eq.s32.totalorder %s13, 0
      %p96 = por %p94, %p95
      %p97 = scmp.ne.s32.totalorder %s89, %s91
      %p98 = scmp.eq.s32.totalorder %s18, 3
      %p99 = por %p97, %p98
      %p100 = scmp.ne.s32.totalorder %s91, %s92
      %p101 = scmp.eq.s32.totalorder %s18, 0
      %p102 = por %p100, %p101
      %p103 = scmp.ne.s32.totalorder %s91, %s92
      %p104 = scmp.eq.s32.totalorder %s19, 3
      %p105 = por %p103, %p104
      %p107 = scmp.ne.s32.totalorder %s92, %s106
      %p108 = scmp.eq.s32.totalorder %s19, 0
      %p109 = por %p107, %p108
      %s111 = sadd.s32 %s110, 1
      %p114 = scmp.eq.s32.totalorder %s13, 3
      %p115 = scmp.ne.s32.totalorder %s110, %s112
      %p116 = scmp.eq.s32.totalorder %s13, 0
      %p117 = por %p115, %p116
      %p118 = scmp.ne.s32.totalorder %s110, %s112
      %p119 = scmp.eq.s32.totalorder %s18, 3
      %p120 = por %p118, %p119
      %p121 = scmp.ne.s32.totalorder %s112, %s113
      %p122 = scmp.eq.s32.totalorder %s18, 0
      %p123 = por %p121, %p122
      %p124 = scmp.ne.s32.totalorder %s112, %s113
      %p125 = scmp.eq.s32.totalorder %s19, 3
      %p126 = por %p124, %p125
      %p128 = scmp.ne.s32.totalorder %s113, %s127
      %p129 = scmp.eq.s32.totalorder %s19, 0
      %p130 = por %p128, %p129
      %s131 = ssub.s32 %s13, %s20
      %p132 = scmp.eq.s32.totalorder %s131, 0
      %s134 = sadd.s32 %s133, 1
      %s135 = scalar_select %p132, %s133, %s134
      %p138 = pneg %p132
      %p139 = scmp.eq.s32.totalorder %s13, 3
      %p140 = por %p138, %p139
      %p141 = scmp.ne.s32.totalorder %s133, %s136
      %p142 = scmp.eq.s32.totalorder %s13, 0
      %p143 = por %p141, %p142
      %p144 = scmp.ne.s32.totalorder %s133, %s136
      %p145 = scmp.eq.s32.totalorder %s18, 3
      %p146 = por %p144, %p145
      %p147 = scmp.ne.s32.totalorder %s136, %s137
      %p148 = scmp.eq.s32.totalorder %s18, 0
      %p149 = por %p147, %p148
      %p150 = scmp.ne.s32.totalorder %s136, %s137
      %p151 = scmp.eq.s32.totalorder %s19, 3
      %p152 = por %p150, %p151
      %p154 = scmp.ne.s32.totalorder %s137, %s153
      %p155 = scmp.eq.s32.totalorder %s19, 0
      %p156 = por %p154, %p155
      %s157 = ssub.s32 %s13, %s20
      %p158 = scmp.eq.s32.totalorder %s157, 0
      %s160 = sadd.s32 %s159, 1
      %s161 = scalar_select %p158, %s159, %s160
      %p164 = pneg %p158
      %p165 = scmp.eq.s32.totalorder %s13, 3
      %p166 = por %p164, %p165
      %p167 = scmp.ne.s32.totalorder %s159, %s162
      %p168 = scmp.eq.s32.totalorder %s13, 0
      %p169 = por %p167, %p168
      %p170 = scmp.ne.s32.totalorder %s159, %s162
      %p171 = scmp.eq.s32.totalorder %s18, 3
      %p172 = por %p170, %p171
      %p173 = scmp.ne.s32.totalorder %s162, %s163
      %p174 = scmp.eq.s32.totalorder %s18, 0
      %p175 = por %p173, %p174
      %p176 = scmp.ne.s32.totalorder %s162, %s163
      %p177 = scmp.eq.s32.totalorder %s19, 3
      %p178 = por %p176, %p177
      %p180 = scmp.ne.s32.totalorder %s163, %s179
      %p181 = scmp.eq.s32.totalorder %s19, 0
      %p182 = por %p180, %p181
      %s183 = ssub.s32 %s13, %s20
      %p184 = scmp.eq.s32.totalorder %s183, 0
      %s186 = sadd.s32 %s185, 1
      %s187 = scalar_select %p184, %s185, %s186
      %p190 = pneg %p184
      %p191 = scmp.eq.s32.totalorder %s13, 3
      %p192 = por %p190, %p191
      %p193 = scmp.ne.s32.totalorder %s185, %s188
      %p194 = scmp.eq.s32.totalorder %s13, 0
      %p195 = por %p193, %p194
      %p196 = scmp.ne.s32.totalorder %s185, %s188
      %p197 = scmp.eq.s32.totalorder %s18, 3
      %p198 = por %p196, %p197
      %p199 = scmp.ne.s32.totalorder %s188, %s189
      %p200 = scmp.eq.s32.totalorder %s18, 0
      %p201 = por %p199, %p200
      %p202 = scmp.ne.s32.totalorder %s188, %s189
      %p203 = scmp.eq.s32.totalorder %s19, 3
      %p204 = por %p202, %p203
      %p206 = scmp.ne.s32.totalorder %s189, %s205
      %p207 = scmp.eq.s32.totalorder %s19, 0
      %p208 = por %p206, %p207
      %p209 = scmp.le.s32.totalorder 1, %s13
      %p210 = scmp.lt.s32.totalorder %s13, 5
      %p211 = pnand %p209, %p210
      %p212 = pneg %p211
      // Predicated region
      $region9: #{actor_critic_forward.1} parent=5 // pred_check
        _
      $region10: #{actor_critic_forward.1} parent=5 // pred_check_branch
        %214 = sbr.rel (%p211) target = $region12
      $region11: #{actor_critic_forward.1} parent=5 // pred_region
        %s215 = ssub.s32 %s13, 1
        // Predicated region
        $region13: #{actor_critic_forward.1} parent=11 // pred_check
          %p216 = pneg %p60
        $region14: #{actor_critic_forward.1} parent=11 // pred_check_branch
          %218 = sbr.rel (%p216) target = $region16
        $region15: #{actor_critic_forward.1} parent=11 // pred_region
          _
        $region16: #{actor_critic_forward.1} parent=11 // pred_fallthru
          _
        // Predicated region
        $region17: #{actor_critic_forward.1} parent=11 // pred_check
          %p219 = pneg %p81
        $region18: #{actor_critic_forward.1} parent=11 // pred_check_branch
          %221 = sbr.rel (%p219) target = $region20
        $region19: #{actor_critic_forward.1} parent=11 // pred_region
          _
        $region20: #{actor_critic_forward.1} parent=11 // pred_fallthru
          _
        // Predicated region
        $region21: #{actor_critic_forward.1} parent=11 // pred_check
          %p222 = pneg %p102
        $region22: #{actor_critic_forward.1} parent=11 // pred_check_branch
          %224 = sbr.rel (%p222) target = $region24
        $region23: #{actor_critic_forward.1} parent=11 // pred_region
          _
        $region24: #{actor_critic_forward.1} parent=11 // pred_fallthru
          _
        // Predicated region
        $region25: #{actor_critic_forward.1} parent=11 // pred_check
          %p225 = pneg %p123
        $region26: #{actor_critic_forward.1} parent=11 // pred_check_branch
          %227 = sbr.rel (%p225) target = $region28
        $region27: #{actor_critic_forward.1} parent=11 // pred_region
          _
        $region28: #{actor_critic_forward.1} parent=11 // pred_fallthru
          _
      $region12: #{actor_critic_forward.1} parent=5 // pred_fallthru
        _
      %p228 = scmp.lt.s32.totalorder %s13, 4
      // Predicated region
      $region29: #{actor_critic_forward.1} parent=5 // pred_check
        %p229 = pneg %p228
      $region30: #{actor_critic_forward.1} parent=5 // pred_check_branch
        %231 = sbr.rel (%p229) target = $region32
      $region31: #{actor_critic_forward.1} parent=5 // pred_region
        // Predicated region
        $region33: #{actor_critic_forward.1} parent=31 // pred_check
          %p232 = pneg %p33
        $region34: #{actor_critic_forward.1} parent=31 // pred_check_branch
          %234 = sbr.rel (%p232) target = $region36
        $region35: #{actor_critic_forward.1} parent=31 // pred_region
          %s235 = smul.u32 8, %s13
          %s236 = ssub.s32 25, %s235
          %p237 = scmp.lt.s32.totalorder %s236, 8
          %s238 = scalar_select %p237, %s236, 8
          %s239 = smul.u32 64, %s238
          %p240 = scmp.lt.s32.totalorder %s235, 24
          %s241 = scalar_select %p240, %s235, 24
          %s242 = smul.addr %s241, 4
          %s243 = scalar_lea.vmem %s0, %s242
          %s244 = smul.u32 8, %s13
          %s245 = ssub.s32 25, %s244
          %p246 = scmp.lt.s32.totalorder %s245, 8
          %s247 = scalar_select %p246, %s245, 8
          %s248 = smul.u32 64, %s247
        $region36: #{actor_critic_forward.1} parent=31 // pred_fallthru
          _
        // Predicated region
        $region37: #{actor_critic_forward.1} parent=31 // pred_check
          %p249 = pneg %p143
        $region38: #{actor_critic_forward.1} parent=31 // pred_check_branch
          %251 = sbr.rel (%p249) target = $region40
        $region39: #{actor_critic_forward.1} parent=31 // pred_region
          %s252 = smul.u32 8, %s13
          %s253 = ssub.s32 25, %s252
          %p254 = scmp.lt.s32.totalorder %s253, 8
          %s255 = scalar_select %p254, %s253, 8
          %s256 = smul.u32 32, %s255
          %p257 = scmp.lt.s32.totalorder %s252, 24
          %s258 = scalar_select %p257, %s252, 24
          %s259 = smul.addr %s258, 2
          %s260 = scalar_lea.vmem %s5, %s259
          %s261 = smul.u32 8, %s13
          %s262 = ssub.s32 25, %s261
          %p263 = scmp.lt.s32.totalorder %s262, 8
          %s264 = scalar_select %p263, %s262, 8
          %s265 = smul.u32 32, %s264
        $region40: #{actor_critic_forward.1} parent=31 // pred_fallthru
          _
        // Predicated region
        $region41: #{actor_critic_forward.1} parent=31 // pred_check
          %p266 = pneg %p169
        $region42: #{actor_critic_forward.1} parent=31 // pred_check_branch
          %268 = sbr.rel (%p266) target = $region44
        $region43: #{actor_critic_forward.1} parent=31 // pred_region
          %s269 = smul.u32 8, %s13
          %s270 = ssub.s32 25, %s269
          %p271 = scmp.lt.s32.totalorder %s270, 8
          %s272 = scalar_select %p271, %s270, 8
          %s273 = smul.u32 128, %s272
          %p274 = scmp.lt.s32.totalorder %s269, 24
          %s275 = scalar_select %p274, %s269, 24
          %s276 = smul.addr %s275, 8
          %s277 = scalar_lea.vmem %s6, %s276
          %s278 = smul.u32 8, %s13
          %s279 = ssub.s32 25, %s278
          %p280 = scmp.lt.s32.totalorder %s279, 8
          %s281 = scalar_select %p280, %s279, 8
          %s282 = smul.u32 128, %s281
        $region44: #{actor_critic_forward.1} parent=31 // pred_fallthru
          _
      $region32: #{actor_critic_forward.1} parent=5 // pred_fallthru
        _
      %p283 = scmp.le.s32.totalorder 1, %s13
      %p284 = scmp.lt.s32.totalorder %s13, 5
      %p285 = pnand %p283, %p284
      %p286 = pneg %p285
      // Predicated region
      $region45: #{actor_critic_forward.1} parent=5 // pred_check
        _
      $region46: #{actor_critic_forward.1} parent=5 // pred_check_branch
        %288 = sbr.rel (%p285) target = $region48
      $region47: #{actor_critic_forward.1} parent=5 // pred_region
        %s289 = ssub.s32 %s13, 1
        %s290 = smul.u32 8, %s18
        %s291 = ssub.s32 25, %s290
        %p292 = scmp.lt.s32.totalorder %s291, 8
        %s293 = scalar_select %p292, %s291, 8
        %s294 = smul.u32 64, %s293
        %p295 = scmp.lt.s32.totalorder %s290, 24
        %s296 = scalar_select %p295, %s290, 24
        %s297 = smul.addr %s296, 4
        %s298 = scalar_lea.vmem %s0, %s297
        %p299 = pneg %p39
        %p300 = pneg %p36
        %p301 = pneg %p60
        %p302 = pneg %p57
        %p303 = pneg %p81
        %p304 = pneg %p78
        %p305 = pneg %p102
        %p306 = pneg %p99
        %p307 = pneg %p123
        %p308 = pneg %p120
        %s309 = smul.u32 8, %s18
        %s310 = ssub.s32 25, %s309
        %p311 = scmp.lt.s32.totalorder %s310, 8
        %s312 = scalar_select %p311, %s310, 8
        %s313 = smul.u32 32, %s312
        %p314 = scmp.lt.s32.totalorder %s309, 24
        %s315 = scalar_select %p314, %s309, 24
        %s316 = smul.addr %s315, 2
        %s317 = scalar_lea.vmem %s5, %s316
        %p318 = pneg %p149
        %p319 = pneg %p146
        %s320 = smul.u32 8, %s18
        %s321 = ssub.s32 25, %s320
        %p322 = scmp.lt.s32.totalorder %s321, 8
        %s323 = scalar_select %p322, %s321, 8
        %s324 = smul.u32 128, %s323
        %p325 = scmp.lt.s32.totalorder %s320, 24
        %s326 = scalar_select %p325, %s320, 24
        %s327 = smul.addr %s326, 8
        %s328 = scalar_lea.vmem %s6, %s327
        %p329 = pneg %p175
        %p330 = pneg %p172
        %p331 = pneg %p201
        %p332 = pneg %p198
        %s333 = sand.u32 %s188, 1
        %s334 = sand.u32 %s188, 1
        %s335 = smul.addr %s334, 64
        %s336 = scalar_lea.vmem [#allocation2], %s335
        %s337 = smul.u32 8, %s18
        %s338 = ssub.s32 25, %s337
        %p339 = scmp.lt.s32.totalorder %s338, 8
        %s340 = scalar_select %p339, %s338, 8
        %s341 = smul.u32 64, %s340
        %p342 = scmp.lt.s32.totalorder %s337, 24
        %s343 = scalar_select %p342, %s337, 24
        %s344 = smul.addr %s343, 4
        %s345 = scalar_lea.vmem %s0, %s344
        %s346 = smul.u32 8, %s18
        %s347 = ssub.s32 25, %s346
        %p348 = scmp.lt.s32.totalorder %s347, 8
        %s349 = scalar_select %p348, %s347, 8
        %s350 = smul.u32 64, %s349
        %s351 = smul.u32 8, %s18
        %s352 = ssub.s32 25, %s351
        %p353 = scmp.lt.s32.totalorder %s352, 8
        %s354 = scalar_select %p353, %s352, 8
        %s355 = smul.u32 32, %s354
        %p356 = scmp.lt.s32.totalorder %s351, 24
        %s357 = scalar_select %p356, %s351, 24
        %s358 = smul.addr %s357, 2
        %s359 = scalar_lea.vmem %s5, %s358
        %s360 = smul.u32 8, %s18
        %s361 = ssub.s32 25, %s360
        %p362 = scmp.lt.s32.totalorder %s361, 8
        %s363 = scalar_select %p362, %s361, 8
        %s364 = smul.u32 32, %s363
        %s365 = smul.u32 8, %s18
        %s366 = ssub.s32 25, %s365
        %p367 = scmp.lt.s32.totalorder %s366, 8
        %s368 = scalar_select %p367, %s366, 8
        %s369 = smul.u32 128, %s368
        %p370 = scmp.lt.s32.totalorder %s365, 24
        %s371 = scalar_select %p370, %s365, 24
        %s372 = smul.addr %s371, 8
        %s373 = scalar_lea.vmem %s6, %s372
        %s374 = smul.u32 8, %s18
        %s375 = ssub.s32 25, %s374
        %p376 = scmp.lt.s32.totalorder %s375, 8
        %s377 = scalar_select %p376, %s375, 8
        %s378 = smul.u32 128, %s377
        %s379 = smul.u32 8, %s18
        %s380 = ssub.s32 25, %s379
        %p381 = scmp.lt.s32.totalorder %s380, 8
        %s382 = scalar_select %p381, %s380, 8
        %s383 = smul.u32 128, %s382
        %v387 = vld [vmem:[%s345] sm:$0xf]
        %v388 = vld [vmem:[%s345 + $0x4] sm:$0xf]
        %v389 = vld [vmem:[%s345 + $0x8] sm:$0xf]
        %v390 = vld [vmem:[%s345 + $0xc] sm:$0xf]
        %v391 = vld [vmem:[%s345 + $0x10] sm:$0xf]
        %v392 = vld [vmem:[%s345 + $0x14] sm:$0xf]
        %v393 = vld [vmem:[%s345 + $0x18] sm:$0xf]
        %v394 = vld [vmem:[%s345 + $0x1c] sm:$0xf]
        %v395 = vld [vmem:[%s1] sm:$0xf]
        %v396 = vld [vmem:[%s1 + $0x4] sm:$0xf]
        %v397 = vld [vmem:[%s1 + $0x8] sm:$0xf]
        %v398 = vld [vmem:[%s1 + $0xc] sm:$0xf]
        %v399 = vld [vmem:[%s2] sm:$0x1]
        %v401 = vlaneseq
        %v402 = vshrl.u32 %v401, 7
        %v403 = vsub.s32 0, %v402
        %v404 = vrot.slane %v399, %v403
        %v414 = vunpack.c.l.b16 %v387
        %v415 = vunpack.c.l.b16 %v388
        %v416 = vunpack.c.l.b16 %v389
        %v417 = vunpack.c.l.b16 %v390
        %v418 = vunpack.c.l.b16 %v391
        %v419 = vunpack.c.l.b16 %v392
        %v420 = vunpack.c.l.b16 %v393
        %v421 = vunpack.c.l.b16 %v394
        %v422 = vpack.c.b16 %v415, %v414
        %v423 = vpack.c.b16 %v417, %v416
        %v424 = vpack.c.b16 %v419, %v418
        %v425 = vpack.c.b16 %v421, %v420
        %v430 = vunpack.c.l.b16 %v395
        %v431 = vunpack.c.l.b16 %v396
        %v432 = vunpack.c.l.b16 %v397
        %v433 = vunpack.c.l.b16 %v398
        %v434 = vpack.c.b16 %v431, %v430
        %v435 = vpack.c.b16 %v433, %v432
        %vm438 = vcmask 261120
        %v440 = vsel %vm438, %v422, 0
        %v443 = vsel %vm438, %v423, 0
        %v446 = vsel %vm438, %v424, 0
        %v449 = vsel %vm438, %v425, 0
        %451 = vmatprep.subr.bf16.mxu0 0
        %452 = vmatpush1.bf16.msra.mxu0 0
        %453 = vmatprep.subr.bf16.mxu0 0
        %454 = vmatpush1.bf16.msra.mxu0 0
        %455 = vmatprep.subr.bf16.mxu0 0
        %456 = vmatpush1.bf16.msra.mxu0 0
        %457 = vmatprep.subr.bf16.mxu0 0
        %458 = vmatpush1.bf16.msra.mxu0 0
        %459 = vmatprep.subr.bf16.mxu0 0
        %460 = vmatpush1.bf16.msra.mxu0 0
        %461 = vmatprep.subr.bf16.mxu0 0
        %462 = vmatpush1.bf16.msra.mxu0 0
        %463 = vmatprep.subr.bf16.mxu0 0
        %464 = vmatpush1.bf16.msra.mxu0 %v435
        %465 = vmatprep.subr.bf16.mxu0 0
        %466 = vmatpush1.bf16.msra.mxu0 %v434
        %467 = vmatprep.subr.bf16.mxu0 0
        %468 = vmatpush2.bf16.msra.mxu0 0
        %469 = vmatprep.subr.bf16.mxu0 0
        %470 = vmatpush2.bf16.msra.mxu0 0
        %471 = vmatprep.subr.bf16.mxu0 0
        %472 = vmatpush2.bf16.msra.mxu0 0
        %473 = vmatprep.subr.bf16.mxu0 0
        %474 = vmatpush2.bf16.msra.mxu0 0
        %475 = vmatprep.subr.bf16.mxu0 0
        %476 = vmatpush2.bf16.msra.mxu0 0
        %477 = vmatprep.subr.bf16.mxu0 0
        %478 = vmatpush2.bf16.msra.mxu0 0
        %479 = vmatprep.subr.bf16.mxu0 0
        %480 = vmatpush2.bf16.msra.mxu0 0
        %481 = vmatprep.subr.bf16.mxu0 0
        %482 = vmatpush2.bf16.msra.mxu0 0
        %483 = vmatprep.mubr.bf16.mxu0 0
        %484 = vmatmul.mubr.bf16.gmra.mxu0 %v440
        %v485 = vpop.f32.mrf.mxu0
        %v486 = vadd.f32 %v404, %v485
        %v487 = vpop.f32.mrf.mxu0
        %v488 = vpop.f32.mrf.mxu0
        %v489 = vadd.f32 %v404, %v488
        %v490 = vpop.f32.mrf.mxu0
        %491 = vmatprep.mubr.bf16.mxu0 0
        %492 = vmatmul.mubr.bf16.gmra.mxu0 %v443
        %v493 = vpop.f32.mrf.mxu0
        %v494 = vadd.f32 %v404, %v493
        %v495 = vpop.f32.mrf.mxu0
        %v496 = vpop.f32.mrf.mxu0
        %v497 = vadd.f32 %v404, %v496
        %v498 = vpop.f32.mrf.mxu0
        %499 = vmatprep.mubr.bf16.mxu0 0
        %500 = vmatmul.mubr.bf16.gmra.mxu0 %v446
        %v501 = vpop.f32.mrf.mxu0
        %v502 = vadd.f32 %v404, %v501
        %v503 = vpop.f32.mrf.mxu0
        %v504 = vpop.f32.mrf.mxu0
        %v505 = vadd.f32 %v404, %v504
        %v506 = vpop.f32.mrf.mxu0
        %507 = vmatprep.mubr.bf16.mxu0 0
        %508 = vmatmul.mubr.bf16.gmra.mxu0 %v449
        %v509 = vpop.f32.mrf.mxu0
        %v510 = vadd.f32 %v404, %v509
        %v511 = vpop.f32.mrf.mxu0
        %v512 = vpop.f32.mrf.mxu0
        %v513 = vadd.f32 %v404, %v512
        %v514 = vpop.f32.mrf.mxu0
        %515 = vdwg.mxu0
        %v516 = vmax.f32 %v486, 0.0
        %v517 = vmax.f32 %v489, 0.0
        %v518 = vmax.f32 %v494, 0.0
        %v519 = vmax.f32 %v497, 0.0
        %v520 = vmax.f32 %v502, 0.0
        %v521 = vmax.f32 %v505, 0.0
        %v522 = vmax.f32 %v510, 0.0
        %v523 = vmax.f32 %v513, 0.0
        %v524 = vpack.c.bf16 %v517, %v516
        %v525 = vpack.c.bf16 %v519, %v518
        %v526 = vpack.c.bf16 %v521, %v520
        %v527 = vpack.c.bf16 %v523, %v522
        %v528 = vld [vmem:[%s3] sm:$0xff]
        %v529 = vld [vmem:[%s3 + $0x8] sm:$0xff]
        %v530 = vld [vmem:[%s3 + $0x10] sm:$0xff]
        %v531 = vld [vmem:[%s3 + $0x18] sm:$0xff]
        %v532 = vld [vmem:[%s3 + $0x20] sm:$0xff]
        %v533 = vld [vmem:[%s3 + $0x28] sm:$0xff]
        %v534 = vld [vmem:[%s3 + $0x30] sm:$0xff]
        %v535 = vld [vmem:[%s3 + $0x38] sm:$0xff]
        %v536 = vld [vmem:[%s4] sm:$0x3]
        %v538 = vlaneseq
        %v539 = vshrl.u32 %v538, 7
        %v540 = vsub.s32 0, %v539
        %v541 = vrot.slane %v536, %v540
        %v542 = vlaneseq
        %v543 = vshrl.u32 %v542, 7
        %v544 = vsub.s32 1, %v543
        %v545 = vrot.slane %v536, %v544
        %v556 = vunpack.c.l.b16 %v528
        %v557 = vunpack.c.h.b16 %v528
        %v558 = vunpack.c.l.b16 %v529
        %v559 = vunpack.c.h.b16 %v529
        %v560 = vunpack.c.l.b16 %v530
        %v561 = vunpack.c.h.b16 %v530
        %v562 = vunpack.c.l.b16 %v531
        %v563 = vunpack.c.h.b16 %v531
        %v564 = vunpack.c.l.b16 %v532
        %v565 = vunpack.c.h.b16 %v532
        %v566 = vunpack.c.l.b16 %v533
        %v567 = vunpack.c.h.b16 %v533
        %v568 = vunpack.c.l.b16 %v534
        %v569 = vunpack.c.h.b16 %v534
        %v570 = vunpack.c.l.b16 %v535
        %v571 = vunpack.c.h.b16 %v535
        %v572 = vpack.c.b16 %v558, %v556
        %v573 = vpack.c.b16 %v559, %v557
        %v574 = vpack.c.b16 %v562, %v560
        %v575 = vpack.c.b16 %v563, %v561
        %v576 = vpack.c.b16 %v566, %v564
        %v577 = vpack.c.b16 %v567, %v565
        %v578 = vpack.c.b16 %v570, %v568
        %v579 = vpack.c.b16 %v571, %v569
        %vm588 = vcmask 523264
        %v590 = vsel %vm588, %v524, 0
        %v593 = vsel %vm588, %v525, 0
        %v596 = vsel %vm588, %v526, 0
        %v599 = vsel %vm588, %v527, 0
        %601 = vmatprep.subr.bf16.mxu0 0
        %602 = vmatpush1.bf16.msra.mxu0 0
        %603 = vmatprep.subr.bf16.mxu0 0
        %604 = vmatpush1.bf16.msra.mxu0 0
        %605 = vmatprep.subr.bf16.mxu0 0
        %606 = vmatpush1.bf16.msra.mxu0 0
        %607 = vmatprep.subr.bf16.mxu0 0
        %608 = vmatpush1.bf16.msra.mxu0 0
        %609 = vmatprep.subr.bf16.mxu0 %v579
        %610 = vmatpush1.bf16.msra.mxu0 %v578
        %611 = vmatprep.subr.bf16.mxu0 %v577
        %612 = vmatpush1.bf16.msra.mxu0 %v576
        %613 = vmatprep.subr.bf16.mxu0 %v575
        %614 = vmatpush1.bf16.msra.mxu0 %v574
        %615 = vmatprep.subr.bf16.mxu0 %v573
        %616 = vmatpush1.bf16.msra.mxu0 %v572
        %617 = vmatprep.subr.bf16.mxu0 0
        %618 = vmatpush2.bf16.msra.mxu0 0
        %619 = vmatprep.subr.bf16.mxu0 0
        %620 = vmatpush2.bf16.msra.mxu0 0
        %621 = vmatprep.subr.bf16.mxu0 0
        %622 = vmatpush2.bf16.msra.mxu0 0
        %623 = vmatprep.subr.bf16.mxu0 0
        %624 = vmatpush2.bf16.msra.mxu0 0
        %625 = vmatprep.subr.bf16.mxu0 0
        %626 = vmatpush2.bf16.msra.mxu0 0
        %627 = vmatprep.subr.bf16.mxu0 0
        %628 = vmatpush2.bf16.msra.mxu0 0
        %629 = vmatprep.subr.bf16.mxu0 0
        %630 = vmatpush2.bf16.msra.mxu0 0
        %631 = vmatprep.subr.bf16.mxu0 0
        %632 = vmatpush2.bf16.msra.mxu0 0
        %633 = vmatprep.mubr.bf16.mxu0 0
        %634 = vmatmul.mubr.bf16.gmra.mxu0 %v590
        %v635 = vpop.f32.mrf.mxu0
        %v636 = vadd.f32 %v541, %v635
        %v637 = vpop.f32.mrf.mxu0
        %v638 = vadd.f32 %v545, %v637
        %v639 = vpop.f32.mrf.mxu0
        %v640 = vadd.f32 %v541, %v639
        %v641 = vpop.f32.mrf.mxu0
        %v642 = vadd.f32 %v545, %v641
        %643 = vmatprep.mubr.bf16.mxu0 0
        %644 = vmatmul.mubr.bf16.gmra.mxu0 %v593
        %v645 = vpop.f32.mrf.mxu0
        %v646 = vadd.f32 %v541, %v645
        %v647 = vpop.f32.mrf.mxu0
        %v648 = vadd.f32 %v545, %v647
        %v649 = vpop.f32.mrf.mxu0
        %v650 = vadd.f32 %v541, %v649
        %v651 = vpop.f32.mrf.mxu0
        %v652 = vadd.f32 %v545, %v651
        %653 = vmatprep.mubr.bf16.mxu0 0
        %654 = vmatmul.mubr.bf16.gmra.mxu0 %v596
        %v655 = vpop.f32.mrf.mxu0
        %v656 = vadd.f32 %v541, %v655
        %v657 = vpop.f32.mrf.mxu0
        %v658 = vadd.f32 %v545, %v657
        %v659 = vpop.f32.mrf.mxu0
        %v660 = vadd.f32 %v541, %v659
        %v661 = vpop.f32.mrf.mxu0
        %v662 = vadd.f32 %v545, %v661
        %663 = vmatprep.mubr.bf16.mxu0 0
        %664 = vmatmul.mubr.bf16.gmra.mxu0 %v599
        %v665 = vpop.f32.mrf.mxu0
        %v666 = vadd.f32 %v541, %v665
        %v667 = vpop.f32.mrf.mxu0
        %v668 = vadd.f32 %v545, %v667
        %v669 = vpop.f32.mrf.mxu0
        %v670 = vadd.f32 %v541, %v669
        %v671 = vpop.f32.mrf.mxu0
        %v672 = vadd.f32 %v545, %v671
        %673 = vdwg.mxu0
        %v674 = vld [vmem:[%s359] sm:$0x3]
        %v675 = vld [vmem:[%s359 + $0x2] sm:$0x3]
        %v676 = vld [vmem:[%s359 + $0x4] sm:$0x3]
        %v677 = vld [vmem:[%s359 + $0x6] sm:$0x3]
        %v678 = vld [vmem:[%s359 + $0x8] sm:$0x3]
        %v679 = vld [vmem:[%s359 + $0xa] sm:$0x3]
        %v680 = vld [vmem:[%s359 + $0xc] sm:$0x3]
        %v681 = vld [vmem:[%s359 + $0xe] sm:$0x3]
        %vm682 = vnez %v674
        %vm683 = vnez %v675
        %vm684 = vnez %v676
        %vm685 = vnez %v677
        %vm686 = vnez %v678
        %vm687 = vnez %v679
        %vm688 = vnez %v680
        %vm689 = vnez %v681
        %v690 = vsel %vm682, 16843009, 0
        %v691 = vsel %vm683, 16843009, 0
        %v692 = vsel %vm684, 16843009, 0
        %v693 = vsel %vm685, 16843009, 0
        %v694 = vsel %vm686, 16843009, 0
        %v695 = vsel %vm687, 16843009, 0
        %v696 = vsel %vm688, 16843009, 0
        %v697 = vsel %vm689, 16843009, 0
        %v698 = vunpack.c.0.s8 %v690
        %v699 = vunpack.c.0.s8 %v691
        %v700 = vunpack.c.0.s8 %v692
        %v701 = vunpack.c.0.s8 %v693
        %v702 = vunpack.c.0.s8 %v694
        %v703 = vunpack.c.0.s8 %v695
        %v704 = vunpack.c.0.s8 %v696
        %v705 = vunpack.c.0.s8 %v697
        %vm706 = vcmp.ne.s32.totalorder %v698, 0
        %vm707 = vcmp.ne.s32.totalorder %v699, 0
        %vm708 = vcmp.ne.s32.totalorder %v700, 0
        %vm709 = vcmp.ne.s32.totalorder %v701, 0
        %vm710 = vcmp.ne.s32.totalorder %v702, 0
        %vm711 = vcmp.ne.s32.totalorder %v703, 0
        %vm712 = vcmp.ne.s32.totalorder %v704, 0
        %vm713 = vcmp.ne.s32.totalorder %v705, 0
        %v714 = vsel %vm706, %v636, -1e+30
        %v715 = vsel %vm707, %v640, -1e+30
        %v716 = vsel %vm708, %v646, -1e+30
        %v717 = vsel %vm709, %v650, -1e+30
        %v718 = vsel %vm710, %v656, -1e+30
        %v719 = vsel %vm711, %v660, -1e+30
        %v720 = vsel %vm712, %v666, -1e+30
        %v721 = vsel %vm713, %v670, -1e+30
        %722 = vmax.xlane.f32.xlu0 %v714
        %v723 = vpop.xlane.xlu0 %722
        %724 = vmax.xlane.f32.xlu0 %v715
        %v725 = vpop.xlane.xlu0 %724
        %726 = vmax.xlane.f32.xlu0 %v716
        %v727 = vpop.xlane.xlu0 %726
        %728 = vmax.xlane.f32.xlu0 %v717
        %v729 = vpop.xlane.xlu0 %728
        %730 = vmax.xlane.f32.xlu0 %v718
        %v731 = vpop.xlane.xlu0 %730
        %732 = vmax.xlane.f32.xlu0 %v719
        %v733 = vpop.xlane.xlu0 %732
        %734 = vmax.xlane.f32.xlu0 %v720
        %v735 = vpop.xlane.xlu0 %734
        %736 = vmax.xlane.f32.xlu0 %v721
        %v737 = vpop.xlane.xlu0 %736
        %v738 = vsub.f32 %v714, %v723
        %v739 = vsub.f32 %v715, %v725
        %v740 = vsub.f32 %v716, %v727
        %v741 = vsub.f32 %v717, %v729
        %v742 = vsub.f32 %v718, %v731
        %v743 = vsub.f32 %v719, %v733
        %v744 = vsub.f32 %v720, %v735
        %v745 = vsub.f32 %v721, %v737
        %v746 = vmul.f32 %v738, 1.442695
        %v747 = vpow.pop %v746
        %v748 = vmul.f32 %v739, 1.442695
        %v749 = vpow.pop %v748
        %v750 = vmul.f32 %v740, 1.442695
        %v751 = vpow.pop %v750
        %v752 = vmul.f32 %v741, 1.442695
        %v753 = vpow.pop %v752
        %v754 = vmul.f32 %v742, 1.442695
        %v755 = vpow.pop %v754
        %v756 = vmul.f32 %v743, 1.442695
        %v757 = vpow.pop %v756
        %v758 = vmul.f32 %v744, 1.442695
        %v759 = vpow.pop %v758
        %v760 = vmul.f32 %v745, 1.442695
        %v761 = vpow.pop %v760
        %762 = vadd.xlane.f32.xlu0 %v747
        %v763 = vpop.xlane.xlu0 %762
        %764 = vadd.xlane.f32.xlu0 %v749
        %v765 = vpop.xlane.xlu0 %764
        %766 = vadd.xlane.f32.xlu0 %v751
        %v767 = vpop.xlane.xlu0 %766
        %768 = vadd.xlane.f32.xlu0 %v753
        %v769 = vpop.xlane.xlu0 %768
        %770 = vadd.xlane.f32.xlu0 %v755
        %v771 = vpop.xlane.xlu0 %770
        %772 = vadd.xlane.f32.xlu0 %v757
        %v773 = vpop.xlane.xlu0 %772
        %774 = vadd.xlane.f32.xlu0 %v759
        %v775 = vpop.xlane.xlu0 %774
        %776 = vadd.xlane.f32.xlu0 %v761
        %v777 = vpop.xlane.xlu0 %776
        %v778 = vlog2.pop %v763
        %v779 = vmul.f32 %v778, 0.6931472
        %v780 = vlog2.pop %v765
        %v781 = vmul.f32 %v780, 0.6931472
        %v782 = vlog2.pop %v767
        %v783 = vmul.f32 %v782, 0.6931472
        %v784 = vlog2.pop %v769
        %v785 = vmul.f32 %v784, 0.6931472
        %v786 = vlog2.pop %v771
        %v787 = vmul.f32 %v786, 0.6931472
        %v788 = vlog2.pop %v773
        %v789 = vmul.f32 %v788, 0.6931472
        %v790 = vlog2.pop %v775
        %v791 = vmul.f32 %v790, 0.6931472
        %v792 = vlog2.pop %v777
        %v793 = vmul.f32 %v792, 0.6931472
        %v794 = vlaneseq
        %v795 = vand.u32 %v794, 127
        %v796 = vld [vmem:[%s373] sm:$0xff]
        %v797 = vld [vmem:[%s373 + $0x8] sm:$0xff]
        %v798 = vld [vmem:[%s373 + $0x10] sm:$0xff]
        %v799 = vld [vmem:[%s373 + $0x18] sm:$0xff]
        %v800 = vld [vmem:[%s373 + $0x20] sm:$0xff]
        %v801 = vld [vmem:[%s373 + $0x28] sm:$0xff]
        %v802 = vld [vmem:[%s373 + $0x30] sm:$0xff]
        %v803 = vld [vmem:[%s373 + $0x38] sm:$0xff]
        %804 = vset.pattern.permute.xlu0 0
        %805 = vperm.xlu0 %804, %v796
        %v806 = vpop.permute.xlu0 %805
        %807 = vset.pattern.permute.xlu0 0
        %808 = vperm.xlu0 %807, %v797
        %v809 = vpop.permute.xlu0 %808
        %810 = vset.pattern.permute.xlu0 0
        %811 = vperm.xlu0 %810, %v798
        %v812 = vpop.permute.xlu0 %811
        %813 = vset.pattern.permute.xlu0 0
        %814 = vperm.xlu0 %813, %v799
        %v815 = vpop.permute.xlu0 %814
        %816 = vset.pattern.permute.xlu0 0
        %817 = vperm.xlu0 %816, %v800
        %v818 = vpop.permute.xlu0 %817
        %819 = vset.pattern.permute.xlu0 0
        %820 = vperm.xlu0 %819, %v801
        %v821 = vpop.permute.xlu0 %820
        %822 = vset.pattern.permute.xlu0 0
        %823 = vperm.xlu0 %822, %v802
        %v824 = vpop.permute.xlu0 %823
        %825 = vset.pattern.permute.xlu0 0
        %826 = vperm.xlu0 %825, %v803
        %v827 = vpop.permute.xlu0 %826
        %vm828 = vcmp.eq.s32.totalorder %v795, %v806
        %vm829 = vcmp.eq.s32.totalorder %v795, %v809
        %vm830 = vcmp.eq.s32.totalorder %v795, %v812
        %vm831 = vcmp.eq.s32.totalorder %v795, %v815
        %vm832 = vcmp.eq.s32.totalorder %v795, %v818
        %vm833 = vcmp.eq.s32.totalorder %v795, %v821
        %vm834 = vcmp.eq.s32.totalorder %v795, %v824
        %vm835 = vcmp.eq.s32.totalorder %v795, %v827
        %v836 = vsel %vm828, %v738, 0.0
        %v837 = vsel %vm829, %v739, 0.0
        %v838 = vsel %vm830, %v740, 0.0
        %v839 = vsel %vm831, %v741, 0.0
        %v840 = vsel %vm832, %v742, 0.0
        %v841 = vsel %vm833, %v743, 0.0
        %v842 = vsel %vm834, %v744, 0.0
        %v843 = vsel %vm835, %v745, 0.0
        %844 = vadd.xlane.f32.xlu0 %v836
        %v845 = vpop.xlane.xlu0 %844
        %846 = vadd.xlane.f32.xlu0 %v837
        %v847 = vpop.xlane.xlu0 %846
        %848 = vadd.xlane.f32.xlu0 %v838
        %v849 = vpop.xlane.xlu0 %848
        %850 = vadd.xlane.f32.xlu0 %v839
        %v851 = vpop.xlane.xlu0 %850
        %852 = vadd.xlane.f32.xlu0 %v840
        %v853 = vpop.xlane.xlu0 %852
        %854 = vadd.xlane.f32.xlu0 %v841
        %v855 = vpop.xlane.xlu0 %854
        %856 = vadd.xlane.f32.xlu0 %v842
        %v857 = vpop.xlane.xlu0 %856
        %858 = vadd.xlane.f32.xlu0 %v843
        %v859 = vpop.xlane.xlu0 %858
        %v860 = vsub.f32 %v845, %v779
        %v861 = vsub.f32 %v847, %v781
        %v862 = vsub.f32 %v849, %v783
        %v863 = vsub.f32 %v851, %v785
        %v864 = vsub.f32 %v853, %v787
        %v865 = vsub.f32 %v855, %v789
        %v866 = vsub.f32 %v857, %v791
        %v867 = vsub.f32 %v859, %v793
        %v868 = vmul.f32 %v747, %v738
        %v869 = vmul.f32 %v749, %v739
        %v870 = vmul.f32 %v751, %v740
        %v871 = vmul.f32 %v753, %v741
        %v872 = vmul.f32 %v755, %v742
        %v873 = vmul.f32 %v757, %v743
        %v874 = vmul.f32 %v759, %v744
        %v875 = vmul.f32 %v761, %v745
        %876 = vadd.xlane.f32.xlu0 %v868
        %v877 = vpop.xlane.xlu0 %876
        %878 = vadd.xlane.f32.xlu0 %v869
        %v879 = vpop.xlane.xlu0 %878
        %880 = vadd.xlane.f32.xlu0 %v870
        %v881 = vpop.xlane.xlu0 %880
        %882 = vadd.xlane.f32.xlu0 %v871
        %v883 = vpop.xlane.xlu0 %882
        %884 = vadd.xlane.f32.xlu0 %v872
        %v885 = vpop.xlane.xlu0 %884
        %886 = vadd.xlane.f32.xlu0 %v873
        %v887 = vpop.xlane.xlu0 %886
        %888 = vadd.xlane.f32.xlu0 %v874
        %v889 = vpop.xlane.xlu0 %888
        %890 = vadd.xlane.f32.xlu0 %v875
        %v891 = vpop.xlane.xlu0 %890
        %v892 = vrcp.pop %v763
        %v893 = vmul.f32 %v877, %v892
        %v894 = vrcp.pop %v765
        %v895 = vmul.f32 %v879, %v894
        %v896 = vrcp.pop %v767
        %v897 = vmul.f32 %v881, %v896
        %v898 = vrcp.pop %v769
        %v899 = vmul.f32 %v883, %v898
        %v900 = vrcp.pop %v771
        %v901 = vmul.f32 %v885, %v900
        %v902 = vrcp.pop %v773
        %v903 = vmul.f32 %v887, %v902
        %v904 = vrcp.pop %v775
        %v905 = vmul.f32 %v889, %v904
        %v906 = vrcp.pop %v777
        %v907 = vmul.f32 %v891, %v906
        %v908 = vsub.f32 %v779, %v893
        %v909 = vsub.f32 %v781, %v895
        %v910 = vsub.f32 %v783, %v897
        %v911 = vsub.f32 %v785, %v899
        %v912 = vsub.f32 %v787, %v901
        %v913 = vsub.f32 %v789, %v903
        %v914 = vsub.f32 %v791, %v905
        %v915 = vsub.f32 %v793, %v907
        %vm916 = vcmask 7168
        %917 = vst.msk [vmem:[%s336] sm:$0xff] %vm916, %v638
        %918 = vst.msk [vmem:[%s336 + $0x8] sm:$0xff] %vm916, %v642
        %919 = vst.msk [vmem:[%s336 + $0x10] sm:$0xff] %vm916, %v648
        %920 = vst.msk [vmem:[%s336 + $0x18] sm:$0xff] %vm916, %v652
        %921 = vst.msk [vmem:[%s336 + $0x20] sm:$0xff] %vm916, %v658
        %922 = vst.msk [vmem:[%s336 + $0x28] sm:$0xff] %vm916, %v662
        %923 = vst.msk [vmem:[%s336 + $0x30] sm:$0xff] %vm916, %v668
        %924 = vst.msk [vmem:[%s336 + $0x38] sm:$0xff] %vm916, %v672
        %vm925 = vcmask 15368
        %926 = vst.msk [vmem:[%s336] sm:$0xff] %vm925, %v860
        %927 = vst.msk [vmem:[%s336 + $0x8] sm:$0xff] %vm925, %v861
        %928 = vst.msk [vmem:[%s336 + $0x10] sm:$0xff] %vm925, %v862
        %929 = vst.msk [vmem:[%s336 + $0x18] sm:$0xff] %vm925, %v863
        %930 = vst.msk [vmem:[%s336 + $0x20] sm:$0xff] %vm925, %v864
        %931 = vst.msk [vmem:[%s336 + $0x28] sm:$0xff] %vm925, %v865
        %932 = vst.msk [vmem:[%s336 + $0x30] sm:$0xff] %vm925, %v866
        %933 = vst.msk [vmem:[%s336 + $0x38] sm:$0xff] %vm925, %v867
        %vm934 = vcmask 23568
        %935 = vst.msk [vmem:[%s336] sm:$0xff] %vm934, %v908
        %936 = vst.msk [vmem:[%s336 + $0x8] sm:$0xff] %vm934, %v909
        %937 = vst.msk [vmem:[%s336 + $0x10] sm:$0xff] %vm934, %v910
        %938 = vst.msk [vmem:[%s336 + $0x18] sm:$0xff] %vm934, %v911
        %939 = vst.msk [vmem:[%s336 + $0x20] sm:$0xff] %vm934, %v912
        %940 = vst.msk [vmem:[%s336 + $0x28] sm:$0xff] %vm934, %v913
        %941 = vst.msk [vmem:[%s336 + $0x30] sm:$0xff] %vm934, %v914
        %942 = vst.msk [vmem:[%s336 + $0x38] sm:$0xff] %vm934, %v915
        %s943 = sand.u32 %s188, 1
        %s944 = sand.u32 %s188, 1
        %s945 = smul.addr %s944, 64
        %s946 = scalar_lea.vmem [#allocation2], %s945
        // Predicated region
        $region49: #{actor_critic_forward.1} parent=47 // pred_check
          %p947 = pneg %p198
        $region50: #{actor_critic_forward.1} parent=47 // pred_check_branch
          %949 = sbr.rel (%p947) target = $region52
        $region51: #{actor_critic_forward.1} parent=47 // pred_region
          %s950 = smul.u32 8, %s18
          %s951 = ssub.s32 25, %s950
          %p952 = scmp.lt.s32.totalorder %s951, 8
          %s953 = scalar_select %p952, %s951, 8
          %s954 = smul.u32 128, %s953
          %p955 = scmp.ne.s32.totalorder 0, %s954
          %s956 = smul.addr %s950, 8
          %s957 = scalar_lea.vmem %s7, %s956
          // Predicated region
          $region53: #{actor_critic_forward.1} parent=51 // pred_check
            %p958 = pneg %p955
          $region54: #{actor_critic_forward.1} parent=51 // pred_check_branch
            %960 = sbr.rel (%p958) target = $region56
          $region55: #{actor_critic_forward.1} parent=51 // pred_region
            // Predicated region
            $region57: #{actor_critic_forward.1} parent=55 // pred_check
              _
            $region58: #{actor_critic_forward.1} parent=55 // pred_check_branch
              %962 = sbr.rel (0) target = $region60
            $region59: #{actor_critic_forward.1} parent=55 // pred_region
              // Predicated region
              $region79: #{actor_critic_forward.1} parent=59 // pred_check
                _
              $region80: #{actor_critic_forward.1} parent=59 // pred_check_branch
                %1026 = sbr.rel (0) target = $region82
              $region81: #{actor_critic_forward.1} parent=59 // pred_region
                %s1027 = sshrl.u32 %s953, 3
                // While loop
                $region83: #{actor_critic_forward.1} parent=81 // loop_pre_header
                  _
                $region84: #{actor_critic_forward.1} parent=81 // loop_header
                  %s1029 = sphi 0, %s1031
                  %p1030 = scmp.ge.s32.totalorder %s1029, %s1027
                  %s1034 = sphi 0, %s1055
                  %s1035 = sphi %s946, %s1058
                  %s1036 = sphi %s957, %s1059
                $region85: #{actor_critic_forward.1} parent=81 // loop_header_branch
                  %1033 = sbr.rel (%p1030) target = $region89
                $region86: #{actor_critic_forward.1} parent=81 // loop_body
                  %v1037 = vld [vmem:[%s1035] sm:$0xff]
                  %1038 = vst [vmem:[%s1036] sm:$0xff] %v1037
                  %v1039 = vld [vmem:[%s1035 + $0x8] sm:$0xff]
                  %1040 = vst [vmem:[%s1036 + $0x8] sm:$0xff] %v1039
                  %v1041 = vld [vmem:[%s1035 + $0x10] sm:$0xff]
                  %1042 = vst [vmem:[%s1036 + $0x10] sm:$0xff] %v1041
                  %v1043 = vld [vmem:[%s1035 + $0x18] sm:$0xff]
                  %1044 = vst [vmem:[%s1036 + $0x18] sm:$0xff] %v1043
                  %v1045 = vld [vmem:[%s1035 + $0x20] sm:$0xff]
                  %1046 = vst [vmem:[%s1036 + $0x20] sm:$0xff] %v1045
                  %v1047 = vld [vmem:[%s1035 + $0x28] sm:$0xff]
                  %1048 = vst [vmem:[%s1036 + $0x28] sm:$0xff] %v1047
                  %v1049 = vld [vmem:[%s1035 + $0x30] sm:$0xff]
                  %1050 = vst [vmem:[%s1036 + $0x30] sm:$0xff] %v1049
                  %v1051 = vld [vmem:[%s1035 + $0x38] sm:$0xff]
                  %1052 = vst [vmem:[%s1036 + $0x38] sm:$0xff] %v1051
                  %s1053 = sadd.s32 1, %s1034
                  %p1054 = scmp.ge.s32.totalorder %s1053, %s1027
                  %s1055 = scalar_select %p1054, 0, %s1053
                  %s1056 = smul.u32 %s1055, 64
                  %s1057 = smul.u32 %s1055, 64
                  %s1058 = scalar_lea.vmem %s946, %s1056 [#allocation2]
                  %s1059 = scalar_lea.vmem %s957, %s1057
                $region87: #{actor_critic_forward.1} parent=81 // loop_footer
                  %s1031 = sadd.s32 %s1029, 1
                $region88: #{actor_critic_forward.1} parent=81 // loop_footer_branch
                  %1028 = sbr.rel target = $region84
                $region89: #{actor_critic_forward.1} parent=81 // loop_exit
                  _
                %s1060 = sshrl.u32 %s953, 3
                %s1061 = sand.u32 %s953, 7
                %s1062 = smul.u32 %s1060, 8
                %s1063 = smul.u32 8, %s1062
                %s1064 = scalar_lea.vmem %s946, %s1063 [#allocation2]
                %s1065 = smul.u32 8, %s1062
                %s1066 = scalar_lea.vmem %s957, %s1065
                // While loop
                $region90: #{actor_critic_forward.1} parent=81 // loop_pre_header
                  _
                $region91: #{actor_critic_forward.1} parent=81 // loop_header
                  %s1068 = sphi 0, %s1070
                  %p1069 = scmp.ge.s32.totalorder %s1068, %s1061
                  %s1073 = sphi 0, %s1080
                  %s1074 = sphi %s1064, %s1083
                  %s1075 = sphi %s1066, %s1084
                $region92: #{actor_critic_forward.1} parent=81 // loop_header_branch
                  %1072 = sbr.rel (%p1069) target = $region96
                $region93: #{actor_critic_forward.1} parent=81 // loop_body
                  %v1076 = vld [vmem:[%s1074] sm:$0xff]
                  %1077 = vst [vmem:[%s1075] sm:$0xff] %v1076
                  %s1078 = sadd.s32 1, %s1073
                  %p1079 = scmp.ge.s32.totalorder %s1078, %s1061
                  %s1080 = scalar_select %p1079, 0, %s1078
                  %s1081 = smul.u32 %s1080, 8
                  %s1082 = smul.u32 %s1080, 8
                  %s1083 = scalar_lea.vmem %s1064, %s1081 [#allocation2]
                  %s1084 = scalar_lea.vmem %s1066, %s1082
                $region94: #{actor_critic_forward.1} parent=81 // loop_footer
                  %s1070 = sadd.s32 %s1068, 1
                $region95: #{actor_critic_forward.1} parent=81 // loop_footer_branch
                  %1067 = sbr.rel target = $region91
                $region96: #{actor_critic_forward.1} parent=81 // loop_exit
                  _
              $region82: #{actor_critic_forward.1} parent=59 // pred_fallthru
                _
              // Predicated region
              $region97: #{actor_critic_forward.1} parent=59 // pred_check
                _
              $region98: #{actor_critic_forward.1} parent=59 // pred_check_branch
                %1086 = sbr.rel target = $region100
              $region99: #{actor_critic_forward.1} parent=59 // pred_region
                _
              $region100: #{actor_critic_forward.1} parent=59 // pred_fallthru
                _
            $region60: #{actor_critic_forward.1} parent=55 // pred_fallthru
              _
            // Predicated region
            $region61: #{actor_critic_forward.1} parent=55 // pred_check
              _
            $region62: #{actor_critic_forward.1} parent=55 // pred_check_branch
              %964 = sbr.rel target = $region64
            $region63: #{actor_critic_forward.1} parent=55 // pred_region
              %s966 = ssub.s32 256, 1
              %s967 = sshrl.u32 %s953, 3
              // While loop
              $region65: #{actor_critic_forward.1} parent=63 // loop_pre_header
                _
              $region66: #{actor_critic_forward.1} parent=63 // loop_header
                %s969 = sphi 0, %s971
                %p970 = scmp.ge.s32.totalorder %s969, %s967
                %s974 = sphi 0, %s995
                %s975 = sphi %s946, %s998
                %s976 = sphi %s957, %s999
              $region67: #{actor_critic_forward.1} parent=63 // loop_header_branch
                %973 = sbr.rel (%p970) target = $region71
              $region68: #{actor_critic_forward.1} parent=63 // loop_body
                %v977 = vld [vmem:[%s975] sm:%s966]
                %978 = vst [vmem:[%s976] sm:%s966] %v977
                %v979 = vld [vmem:[%s975 + $0x8] sm:%s966]
                %980 = vst [vmem:[%s976 + $0x8] sm:%s966] %v979
                %v981 = vld [vmem:[%s975 + $0x10] sm:%s966]
                %982 = vst [vmem:[%s976 + $0x10] sm:%s966] %v981
                %v983 = vld [vmem:[%s975 + $0x18] sm:%s966]
                %984 = vst [vmem:[%s976 + $0x18] sm:%s966] %v983
                %v985 = vld [vmem:[%s975 + $0x20] sm:%s966]
                %986 = vst [vmem:[%s976 + $0x20] sm:%s966] %v985
                %v987 = vld [vmem:[%s975 + $0x28] sm:%s966]
                %988 = vst [vmem:[%s976 + $0x28] sm:%s966] %v987
                %v989 = vld [vmem:[%s975 + $0x30] sm:%s966]
                %990 = vst [vmem:[%s976 + $0x30] sm:%s966] %v989
                %v991 = vld [vmem:[%s975 + $0x38] sm:%s966]
                %992 = vst [vmem:[%s976 + $0x38] sm:%s966] %v991
                %s993 = sadd.s32 1, %s974
                %p994 = scmp.ge.s32.totalorder %s993, %s967
                %s995 = scalar_select %p994, 0, %s993
                %s996 = smul.u32 %s995, 64
                %s997 = smul.u32 %s995, 64
                %s998 = scalar_lea.vmem %s946, %s996 [#allocation2]
                %s999 = scalar_lea.vmem %s957, %s997
              $region69: #{actor_critic_forward.1} parent=63 // loop_footer
                %s971 = sadd.s32 %s969, 1
              $region70: #{actor_critic_forward.1} parent=63 // loop_footer_branch
                %968 = sbr.rel target = $region66
              $region71: #{actor_critic_forward.1} parent=63 // loop_exit
                _
              %s1000 = sshrl.u32 %s953, 3
              %s1001 = sand.u32 %s953, 7
              %s1002 = smul.u32 %s1000, 8
              %s1003 = smul.u32 8, %s1002
              %s1004 = scalar_lea.vmem %s946, %s1003 [#allocation2]
              %s1005 = smul.u32 8, %s1002
              %s1006 = scalar_lea.vmem %s957, %s1005
              // While loop
              $region72: #{actor_critic_forward.1} parent=63 // loop_pre_header
                _
              $region73: #{actor_critic_forward.1} parent=63 // loop_header
                %s1008 = sphi 0, %s1010
                %p1009 = scmp.ge.s32.totalorder %s1008, %s1001
                %s1013 = sphi 0, %s1020
                %s1014 = sphi %s1004, %s1023
                %s1015 = sphi %s1006, %s1024
              $region74: #{actor_critic_forward.1} parent=63 // loop_header_branch
                %1012 = sbr.rel (%p1009) target = $region78
              $region75: #{actor_critic_forward.1} parent=63 // loop_body
                %v1016 = vld [vmem:[%s1014] sm:%s966]
                %1017 = vst [vmem:[%s1015] sm:%s966] %v1016
                %s1018 = sadd.s32 1, %s1013
                %p1019 = scmp.ge.s32.totalorder %s1018, %s1001
                %s1020 = scalar_select %p1019, 0, %s1018
                %s1021 = smul.u32 %s1020, 8
                %s1022 = smul.u32 %s1020, 8
                %s1023 = scalar_lea.vmem %s1004, %s1021 [#allocation2]
                %s1024 = scalar_lea.vmem %s1006, %s1022
              $region76: #{actor_critic_forward.1} parent=63 // loop_footer
                %s1010 = sadd.s32 %s1008, 1
              $region77: #{actor_critic_forward.1} parent=63 // loop_footer_branch
                %1007 = sbr.rel target = $region73
              $region78: #{actor_critic_forward.1} parent=63 // loop_exit
                _
            $region64: #{actor_critic_forward.1} parent=55 // pred_fallthru
              _
          $region56: #{actor_critic_forward.1} parent=51 // pred_fallthru
            _
          %1087 = vnop
        $region52: #{actor_critic_forward.1} parent=47 // pred_fallthru
          _
      $region48: #{actor_critic_forward.1} parent=5 // pred_fallthru
        _
      %p1088 = scmp.le.s32.totalorder 2, %s13
      // Predicated region
      $region101: #{actor_critic_forward.1} parent=5 // pred_check
        %p1089 = pneg %p1088
      $region102: #{actor_critic_forward.1} parent=5 // pred_check_branch
        %1091 = sbr.rel (%p1089) target = $region104
      $region103: #{actor_critic_forward.1} parent=5 // pred_region
        %s1092 = ssub.s32 %s13, 2
        // Predicated region
        $region105: #{actor_critic_forward.1} parent=103 // pred_check
          %p1093 = pneg %p204
        $region106: #{actor_critic_forward.1} parent=103 // pred_check_branch
          %1095 = sbr.rel (%p1093) target = $region108
        $region107: #{actor_critic_forward.1} parent=103 // pred_region
          %s1096 = sand.u32 %s189, 1
          %s1097 = sand.u32 %s189, 1
          %s1098 = smul.addr %s1097, 64
          %s1099 = scalar_lea.vmem [#allocation2], %s1098
        $region108: #{actor_critic_forward.1} parent=103 // pred_fallthru
          _
      $region104: #{actor_critic_forward.1} parent=5 // pred_fallthru
        _
    $region6: #{actor_critic_forward.1} parent=1 // loop_footer
      %s17 = sadd.s32 1, %s13
    $region7: #{actor_critic_forward.1} parent=1 // loop_footer_branch
      %12 = sbr.rel target = $region3
    $region8: #{actor_critic_forward.1} parent=1 // loop_exit
      _

</llo_original>
